<compile_context>
chip_gen: v7x
topology: tpu7x:2x2x1
jax: 0.10.0
libtpu: 0.0.40
codegen_flags: <defaults>
</compile_context>

<pallas_src>
import functools

import jax
import jax.numpy as jnp
from jax.experimental import pallas as pl
from jax.experimental.pallas import tpu as pltpu


def _conv_kernel(w_ref, x_ref, o_ref, xp_ref, *, kh, kw, ph, pw,
                 H, W, H_out, W_out):
    """One block of TILE_N planes in natural (N, H, W) layout.

    w_ref : SMEM (kh*kw,) f32               shared filter (scalar-prefetched)
    x_ref : VMEM (TILE_N, H, W)             input planes
    o_ref : VMEM (TILE_N, H_out, W_out)     output planes
    xp_ref: VMEM (TILE_N, Hp, Wp) scratch   replicate-padded planes
    """
    Hp, Wp = H + 2 * ph, W + 2 * pw
    tile_n = x_ref.shape[0]

    x = x_ref[...].astype(xp_ref.dtype)

    # ---- fused replicate padding, whole-strip stores ----
    xp_ref[:, ph:ph + H, pw:pw + W] = x
    if pw > 0:
        left = jnp.broadcast_to(x[:, :, 0:1], (tile_n, H, pw))
        right = jnp.broadcast_to(x[:, :, W - 1:W], (tile_n, H, pw))
        xp_ref[:, ph:ph + H, 0:pw] = left
        xp_ref[:, ph:ph + H, pw + W:Wp] = right
    for r in range(ph):
        # Full-width copies of the already W-padded first/last interior rows,
        # so the corners are filled correctly as well.
        xp_ref[:, r:r + 1, :] = xp_ref[:, ph:ph + 1, :]
        xp_ref[:, Hp - 1 - r:Hp - r, :] = xp_ref[:, ph + H - 1:ph + H, :]

    # ---- 2-D MAC over the (small) filter, fully unrolled ----
    w = [w_ref[t] for t in range(kh * kw)]      # hoisted SMEM scalar reads

    acc = None                                  # first tap initializes acc
    for i in range(kh):
        for j in range(kw):
            tap = xp_ref[:, i:i + H_out, j:j + W_out].astype(jnp.float32)
            term = w[i * kw + j] * tap
            acc = term if acc is None else acc + term
    o_ref[...] = acc.astype(o_ref.dtype)


def _padded_plane_bytes(h, w, dtype):
    """VMEM footprint of one (h, w) plane after (sublane, lane) tiling."""
    itemsize = jnp.dtype(dtype).itemsize
    sub = 8 * max(1, 4 // itemsize)             # 8 rows f32, 16 bf16, 32 int8
    rows = -(-h // sub) * sub
    cols = -(-w // 128) * 128
    return rows * cols * itemsize


def _vmem_capacity_bytes():
    try:
        info = pltpu.get_tpu_info()
        cap = getattr(info, "vmem_capacity_bytes", None)
        if cap:
            return int(cap)
    except Exception:
        pass
    return 64 * 1024 * 1024                     # conservative: v7x per-TC VMEM


def _choose_tile_n(N, per_plane_bytes, vmem_cap):
    """Planes per grid step: largest divisor of N within a VMEM budget, hard
    cap 256 to keep the live f32 accumulator small (avoid spill traffic)."""
    budget = max(4 << 20, min(16 << 20, vmem_cap // 8))
    cap = int(max(1, min(256, budget // max(1, per_plane_bytes), N)))
    tile = 1
    for t in range(cap, 0, -1):
        if N % t == 0:
            tile = t
            break
    n_blocks = N // tile
    # Prefer an even number of grid steps so v7x's two TensorCores balance.
    if n_blocks > 1 and n_blocks % 2 == 1 and tile % 2 == 0:
        tile //= 2
    return tile


def single_filter_convolution(x, blur_para):
    """x: (B, C, H, W); blur_para: (1, 1, kh, kw). Returns (B, C, H_out, W_out)."""
    B, C, H, W = x.shape
    kh, kw = int(blur_para.shape[2]), int(blur_para.shape[3])
    ph, pw = kh // 2, kw // 2                   # matches F.pad(..., 'replicate')
    Hp, Wp = H + 2 * ph, W + 2 * pw
    H_out, W_out = Hp - kh + 1, Wp - kw + 1     # == H, W for odd kernel sizes

    N = B * C
    # Free relayout: (B, C, H, W) -> (N, H, W) reshapes contiguous dims only,
    # so no HBM copy is materialized on either side of the pallas_call.
    x_nhw = x.reshape(N, H, W)

    scratch_dtype = jnp.bfloat16 if x.dtype == jnp.bfloat16 else jnp.float32

    per_plane = (2 * _padded_plane_bytes(H, W, x.dtype)              # in, 2-buf
                 + 2 * _padded_plane_bytes(H_out, W_out, x.dtype)    # out, 2-buf
                 + _padded_plane_bytes(Hp, Wp, scratch_dtype)        # scratch
                 + _padded_plane_bytes(H_out, W_out, jnp.float32))   # live acc
    vmem_cap = _vmem_capacity_bytes()
    tile_n = _choose_tile_n(N, per_plane, vmem_cap)
    n_blocks = N // tile_n

    w_flat = blur_para.reshape(kh * kw).astype(jnp.float32)

    kernel = functools.partial(_conv_kernel, kh=kh, kw=kw, ph=ph, pw=pw,
                               H=H, W=W, H_out=H_out, W_out=W_out)

    needed = tile_n * per_plane + (2 << 20)
    vmem_limit = int(min(max(needed, 32 << 20), (vmem_cap * 3) // 4))
    vmem_limit = int(max(vmem_limit, needed))   # never request less than used

    itemsize = jnp.dtype(x.dtype).itemsize
    cost = pl.CostEstimate(
        flops=2 * kh * kw * H_out * W_out * N,
        transcendentals=0,
        bytes_accessed=(N * H * W * itemsize
                        + N * H_out * W_out * itemsize
                        + kh * kw * 4),
    )

    # TODO(synk): very large H*W with small N would additionally need spatial
    # (H) tiling with kh-1 halo rows per block; not needed at these shapes.
    out_nhw = pl.pallas_call(
        kernel,
        out_shape=jax.ShapeDtypeStruct((N, H_out, W_out), x.dtype),
        grid_spec=pltpu.PrefetchScalarGridSpec(
            num_scalar_prefetch=1,              # filter lives in SMEM
            grid=(n_blocks,),
            in_specs=[
                pl.BlockSpec((tile_n, H, W), lambda n, w: (n, 0, 0)),
            ],
            out_specs=pl.BlockSpec((tile_n, H_out, W_out),
                                   lambda n, w: (n, 0, 0)),
            scratch_shapes=[pltpu.VMEM((tile_n, Hp, Wp), scratch_dtype)],
        ),
        compiler_params=pltpu.CompilerParams(
            dimension_semantics=("parallel",),
            vmem_limit_bytes=vmem_limit,
        ),
        cost_estimate=cost,
    )(w_flat, x_nhw)

    return out_nhw.reshape(B, C, H_out, W_out)


def _reference(x, blur_para):
    """Pure-jnp reference (same sliding-window math, NCHW layout)."""
    B, C, H, W = x.shape
    kh, kw = blur_para.shape[2], blur_para.shape[3]
    ph, pw = kh // 2, kw // 2
    xp = jnp.pad(x, ((0, 0), (0, 0), (ph, ph), (pw, pw)), mode="edge")
    Hp, Wp = H + 2 * ph, W + 2 * pw
    H_out, W_out = Hp - kh + 1, Wp - kw + 1
    acc = jnp.zeros((B, C, H_out, W_out), jnp.float32)
    for i in range(kh):
        for j in range(kw):
            acc = acc + blur_para[0, 0, i, j] * xp[:, :, i:i + H_out, j:j + W_out]
    return acc.astype(x.dtype)


if __name__ == "__main__":
    key = jax.random.PRNGKey(0)
    k_w, k_x = jax.random.split(key)

    ksize = 3                                   # kernel_size = (3, 3)
    B, C, H, W = 2, 4, 16, 16

    blur_para = jax.random.normal(k_w, (1, 1, ksize, ksize), dtype=jnp.float32)
    x = jax.random.normal(k_x, (B, C, H, W), dtype=jnp.float32)

    out = single_filter_convolution(x, blur_para)
    out = jax.block_until_ready(out)

    ref = _reference(x, blur_para)
    assert out.shape == ref.shape, (out.shape, ref.shape)
    assert jnp.allclose(out, ref, atol=1e-5, rtol=1e-5), "mismatch vs reference"

    print("KERNEL_OK")
</pallas_src>

<mosaic_0001>
module attributes {stable_mosaic.version = 11 : i64} {
  func.func @_conv_kernel(%arg0: i32, %arg1: memref<9xf32, #tpu.memory_space<smem>>, %arg2: memref<8x16x16xf32, #tpu.memory_space<vmem>>, %arg3: memref<8x16x16xf32, #tpu.memory_space<vmem>>, %arg4: memref<8x18x18xf32, #tpu.memory_space<vmem>>) attributes {dimension_semantics = [#tpu.dimension_semantics<parallel>], iteration_bounds = array<i64: 1>, scalar_prefetch = 1 : i64, scratch_operands = 1 : i64, tpu.core_type = #tpu.core_type<tc>, window_params = [{transform_indices = @transform_0, window_bounds = array<i64: 8, 16, 16>}, {transform_indices = @transform_1, window_bounds = array<i64: 8, 16, 16>}]} {
    %c0 = arith.constant 0 : index
    %c0_0 = arith.constant 0 : index
    %c0_1 = arith.constant 0 : index
    %0 = vector.load %arg2[%c0, %c0_0, %c0_1] : memref<8x16x16xf32, #tpu.memory_space<vmem>>, vector<8x16x16xf32>
    %c0_2 = arith.constant 0 : index
    %c1 = arith.constant 1 : index
    %c1_3 = arith.constant 1 : index
    %1 = vector.load %arg4[%c0_2, %c1, %c1_3] : memref<8x18x18xf32, #tpu.memory_space<vmem>>, vector<8x16x16xf32>
    tpu.vector_store %arg4[%c0_2, %c1, %c1_3], %0 {strides = array<i32>} : memref<8x18x18xf32, #tpu.memory_space<vmem>>, vector<8x16x16xf32>,
    %2 = vector.extract_strided_slice %0 {offsets = [0, 0, 0], sizes = [8, 16, 1], strides = [1, 1, 1]} : vector<8x16x16xf32> to vector<8x16x1xf32>
    %3 = vector.extract_strided_slice %0 {offsets = [0, 0, 15], sizes = [8, 16, 1], strides = [1, 1, 1]} : vector<8x16x16xf32> to vector<8x16x1xf32>
    %c0_4 = arith.constant 0 : index
    %c1_5 = arith.constant 1 : index
    %c0_6 = arith.constant 0 : index
    %4 = vector.load %arg4[%c0_4, %c1_5, %c0_6] : memref<8x18x18xf32, #tpu.memory_space<vmem>>, vector<8x16x1xf32>
    tpu.vector_store %arg4[%c0_4, %c1_5, %c0_6], %2 {strides = array<i32>} : memref<8x18x18xf32, #tpu.memory_space<vmem>>, vector<8x16x1xf32>,
    %c0_7 = arith.constant 0 : index
    %c1_8 = arith.constant 1 : index
    %c17 = arith.constant 17 : index
    %5 = vector.load %arg4[%c0_7, %c1_8, %c17] : memref<8x18x18xf32, #tpu.memory_space<vmem>>, vector<8x16x1xf32>
    tpu.vector_store %arg4[%c0_7, %c1_8, %c17], %3 {strides = array<i32>} : memref<8x18x18xf32, #tpu.memory_space<vmem>>, vector<8x16x1xf32>,
    %c0_9 = arith.constant 0 : index
    %c1_10 = arith.constant 1 : index
    %c0_11 = arith.constant 0 : index
    %6 = vector.load %arg4[%c0_9, %c1_10, %c0_11] : memref<8x18x18xf32, #tpu.memory_space<vmem>>, vector<8x1x18xf32>
    %c0_12 = arith.constant 0 : index
    %c0_13 = arith.constant 0 : index
    %c0_14 = arith.constant 0 : index
    %7 = vector.load %arg4[%c0_12, %c0_13, %c0_14] : memref<8x18x18xf32, #tpu.memory_space<vmem>>, vector<8x1x18xf32>
    tpu.vector_store %arg4[%c0_12, %c0_13, %c0_14], %6 {strides = array<i32>} : memref<8x18x18xf32, #tpu.memory_space<vmem>>, vector<8x1x18xf32>,
    %c0_15 = arith.constant 0 : index
    %c16 = arith.constant 16 : index
    %c0_16 = arith.constant 0 : index
    %8 = vector.load %arg4[%c0_15, %c16, %c0_16] : memref<8x18x18xf32, #tpu.memory_space<vmem>>, vector<8x1x18xf32>
    %c0_17 = arith.constant 0 : index
    %c17_18 = arith.constant 17 : index
    %c0_19 = arith.constant 0 : index
    %9 = vector.load %arg4[%c0_17, %c17_18, %c0_19] : memref<8x18x18xf32, #tpu.memory_space<vmem>>, vector<8x1x18xf32>
    tpu.vector_store %arg4[%c0_17, %c17_18, %c0_19], %8 {strides = array<i32>} : memref<8x18x18xf32, #tpu.memory_space<vmem>>, vector<8x1x18xf32>,
    %c0_20 = arith.constant 0 : index
    %10 = memref.load %arg1[%c0_20] : memref<9xf32, #tpu.memory_space<smem>>
    %c1_21 = arith.constant 1 : index
    %11 = memref.load %arg1[%c1_21] : memref<9xf32, #tpu.memory_space<smem>>
    %c2 = arith.constant 2 : index
    %12 = memref.load %arg1[%c2] : memref<9xf32, #tpu.memory_space<smem>>
    %c3 = arith.constant 3 : index
    %13 = memref.load %arg1[%c3] : memref<9xf32, #tpu.memory_space<smem>>
    %c4 = arith.constant 4 : index
    %14 = memref.load %arg1[%c4] : memref<9xf32, #tpu.memory_space<smem>>
    %c5 = arith.constant 5 : index
    %15 = memref.load %arg1[%c5] : memref<9xf32, #tpu.memory_space<smem>>
    %c6 = arith.constant 6 : index
    %16 = memref.load %arg1[%c6] : memref<9xf32, #tpu.memory_space<smem>>
    %c7 = arith.constant 7 : index
    %17 = memref.load %arg1[%c7] : memref<9xf32, #tpu.memory_space<smem>>
    %c8 = arith.constant 8 : index
    %18 = memref.load %arg1[%c8] : memref<9xf32, #tpu.memory_space<smem>>
    %c0_22 = arith.constant 0 : index
    %c0_23 = arith.constant 0 : index
    %c0_24 = arith.constant 0 : index
    %19 = vector.load %arg4[%c0_22, %c0_23, %c0_24] : memref<8x18x18xf32, #tpu.memory_space<vmem>>, vector<8x16x16xf32>
    %20 = vector.broadcast %10 : f32 to vector<8x16x16xf32>
    %21 = arith.mulf %20, %19 : vector<8x16x16xf32>
    %c0_25 = arith.constant 0 : index
    %c0_26 = arith.constant 0 : index
    %c1_27 = arith.constant 1 : index
    %22 = vector.load %arg4[%c0_25, %c0_26, %c1_27] : memref<8x18x18xf32, #tpu.memory_space<vmem>>, vector<8x16x16xf32>
    %23 = vector.broadcast %11 : f32 to vector<8x16x16xf32>
    %24 = arith.mulf %23, %22 : vector<8x16x16xf32>
    %25 = arith.addf %21, %24 : vector<8x16x16xf32>
    %c0_28 = arith.constant 0 : index
    %c0_29 = arith.constant 0 : index
    %c2_30 = arith.constant 2 : index
    %26 = vector.load %arg4[%c0_28, %c0_29, %c2_30] : memref<8x18x18xf32, #tpu.memory_space<vmem>>, vector<8x16x16xf32>
    %27 = vector.broadcast %12 : f32 to vector<8x16x16xf32>
    %28 = arith.mulf %27, %26 : vector<8x16x16xf32>
    %29 = arith.addf %25, %28 : vector<8x16x16xf32>
    %c0_31 = arith.constant 0 : index
    %c1_32 = arith.constant 1 : index
    %c0_33 = arith.constant 0 : index
    %30 = vector.load %arg4[%c0_31, %c1_32, %c0_33] : memref<8x18x18xf32, #tpu.memory_space<vmem>>, vector<8x16x16xf32>
    %31 = vector.broadcast %13 : f32 to vector<8x16x16xf32>
    %32 = arith.mulf %31, %30 : vector<8x16x16xf32>
    %33 = arith.addf %29, %32 : vector<8x16x16xf32>
    %c0_34 = arith.constant 0 : index
    %c1_35 = arith.constant 1 : index
    %c1_36 = arith.constant 1 : index
    %34 = vector.load %arg4[%c0_34, %c1_35, %c1_36] : memref<8x18x18xf32, #tpu.memory_space<vmem>>, vector<8x16x16xf32>
    %35 = vector.broadcast %14 : f32 to vector<8x16x16xf32>
    %36 = arith.mulf %35, %34 : vector<8x16x16xf32>
    %37 = arith.addf %33, %36 : vector<8x16x16xf32>
    %c0_37 = arith.constant 0 : index
    %c1_38 = arith.constant 1 : index
    %c2_39 = arith.constant 2 : index
    %38 = vector.load %arg4[%c0_37, %c1_38, %c2_39] : memref<8x18x18xf32, #tpu.memory_space<vmem>>, vector<8x16x16xf32>
    %39 = vector.broadcast %15 : f32 to vector<8x16x16xf32>
    %40 = arith.mulf %39, %38 : vector<8x16x16xf32>
    %41 = arith.addf %37, %40 : vector<8x16x16xf32>
    %c0_40 = arith.constant 0 : index
    %c2_41 = arith.constant 2 : index
    %c0_42 = arith.constant 0 : index
    %42 = vector.load %arg4[%c0_40, %c2_41, %c0_42] : memref<8x18x18xf32, #tpu.memory_space<vmem>>, vector<8x16x16xf32>
    %43 = vector.broadcast %16 : f32 to vector<8x16x16xf32>
    %44 = arith.mulf %43, %42 : vector<8x16x16xf32>
    %45 = arith.addf %41, %44 : vector<8x16x16xf32>
    %c0_43 = arith.constant 0 : index
    %c2_44 = arith.constant 2 : index
    %c1_45 = arith.constant 1 : index
    %46 = vector.load %arg4[%c0_43, %c2_44, %c1_45] : memref<8x18x18xf32, #tpu.memory_space<vmem>>, vector<8x16x16xf32>
    %47 = vector.broadcast %17 : f32 to vector<8x16x16xf32>
    %48 = arith.mulf %47, %46 : vector<8x16x16xf32>
    %49 = arith.addf %45, %48 : vector<8x16x16xf32>
    %c0_46 = arith.constant 0 : index
    %c2_47 = arith.constant 2 : index
    %c2_48 = arith.constant 2 : index
    %50 = vector.load %arg4[%c0_46, %c2_47, %c2_48] : memref<8x18x18xf32, #tpu.memory_space<vmem>>, vector<8x16x16xf32>
    %51 = vector.broadcast %18 : f32 to vector<8x16x16xf32>
    %52 = arith.mulf %51, %50 : vector<8x16x16xf32>
    %53 = arith.addf %49, %52 : vector<8x16x16xf32>
    %c0_49 = arith.constant 0 : index
    %c0_50 = arith.constant 0 : index
    %c0_51 = arith.constant 0 : index
    %54 = vector.load %arg3[%c0_49, %c0_50, %c0_51] : memref<8x16x16xf32, #tpu.memory_space<vmem>>, vector<8x16x16xf32>
    tpu.vector_store %arg3[%c0_49, %c0_50, %c0_51], %53 {strides = array<i32>} : memref<8x16x16xf32, #tpu.memory_space<vmem>>, vector<8x16x16xf32>,
    return
  }
  func.func @transform_0(%arg0: i32, %arg1: memref<9xf32, #tpu.memory_space<smem>>) -> (i32, i32, i32) {
    %c0_i32 = arith.constant 0 : i32
    %c0_i32_0 = arith.constant 0 : i32
    %c0_i32_1 = arith.constant 0 : i32
    return %arg0, %c0_i32, %c0_i32_0 : i32, i32, i32
  }
  func.func @transform_1(%arg0: i32, %arg1: memref<9xf32, #tpu.memory_space<smem>>) -> (i32, i32, i32) {
    %c0_i32 = arith.constant 0 : i32
    %c0_i32_0 = arith.constant 0 : i32
    %c0_i32_1 = arith.constant 0 : i32
    return %arg0, %c0_i32, %c0_i32_0 : i32, i32, i32
  }
}

</mosaic_0001>

<llo_original>
// kernel: tpu_custom_call.1
$region0: #{tpu_custom_call.1}
  #allocation0 [shape = 'u32[]', space=smem, size = 0x4, offset = 0x4, fixed_abs, tag = 'smem constant byte address 0x4 - core index']
  #allocation1 [shape = 'u32[144,128]{1,0:T(1,128)}', space=vmem, size = 0x12000, scoped, tag = 'internal scratch']
  #allocation2 [shape = 'f32[8,18,18]{2,1,0:T(8,128)}', space=vmem, size = 0x18000, scoped, tag = 'scratch operand']
  #allocation3 [shape = 's32[1]{0}', space=sflag, size = 0x4, scoped, tag = 'scoped memory for tpu_custom_call.1']
  #allocation4 [shape = 'u8[512]{0}', space=smem, size = 0x200, scoped, tag = 'prefetched SMEM operand 0']
  %s0 = inlined_call_operand.hbm [shape: f32[9], index: 0, kind: input, shape index: {}]
  %s1 = inlined_call_operand.hbm [shape: f32[8,16,16], index: 1, kind: input, shape index: {}]
  %s2 = inlined_call_operand.hbm [shape: f32[8,16,16], index: 2, kind: output, shape index: {}]
  %s3 = sld [smem:[#allocation0]]
  $region18: #{tpu_custom_call.1} parent=0
    _
  %s5 = ssub.s32 1, %s3
  %s6 = scalar_select 0, %s5, %s3
  %8 = dma.hbm_to_smem %s0, 16, [#allocation4], [#allocation3]
  %9 = dma.done [#allocation3], 16
  %10 = sfence
  $region1: #{tpu_custom_call.1} parent=0
    #allocation5 [shape = 'u8[65536]{0}', space=vmem, size = 0x10000, scoped, tag = 'input window, operand 1, single buffered']
    #allocation6 [shape = 's32[1]{0}', space=sflag, size = 0x4, scoped, tag = 'scoped memory for tpu_custom_call.1']
    #allocation7 [shape = 's32[1]{0}', space=sflag, size = 0x4, scoped, tag = 'scoped memory for tpu_custom_call.1']
    #allocation8 [shape = 'u8[65536]{0}', space=vmem, size = 0x10000, scoped, tag = 'output window, operand 0, single buffered']
    %11 = vsyncpa [#allocation6], 0
    %12 = vsyncpa [#allocation7], 0
    // Predicated region
    $region2: #{tpu_custom_call.1} parent=1 // pred_check
      _
    $region3: #{tpu_custom_call.1} parent=1 // pred_check_branch
      %14 = sbr.rel (0) target = $region5
    $region4: #{tpu_custom_call.1} parent=1 // pred_region
      %s16 = ssub.s32 2048, 2048
      %17 = vsyncadd [#allocation6], %s16
      %s18 = sshll.u32 [#allocation5], 4
      %s19 = int_to_ptr.vmem [resolvable:$true] %s18
      %24 = dma.hbm_to_vmem [thread:$0]  %s1, 2048, %s19, [#allocation6], 128, 128, 8
    $region5: #{tpu_custom_call.1} parent=1 // pred_fallthru
      _
    // Predicated region
    $region6: #{tpu_custom_call.1} parent=1 // pred_check
      _
    $region7: #{tpu_custom_call.1} parent=1 // pred_check_branch
      %26 = sbr.rel (0) target = $region9
    $region8: #{tpu_custom_call.1} parent=1 // pred_region
      %27 = dma.done [#allocation6], 2048
    $region9: #{tpu_custom_call.1} parent=1 // pred_fallthru
      _
    %v28 = vld [vmem:[#allocation5] sm:$0xff]
    %v29 = vld [vmem:[#allocation5 + $0x8] sm:$0xff]
    %v30 = vld [vmem:[#allocation5 + $0x10] sm:$0xff]
    %v31 = vld [vmem:[#allocation5 + $0x18] sm:$0xff]
    %v32 = vld [vmem:[#allocation5 + $0x20] sm:$0xff]
    %v33 = vld [vmem:[#allocation5 + $0x28] sm:$0xff]
    %v34 = vld [vmem:[#allocation5 + $0x30] sm:$0xff]
    %v35 = vld [vmem:[#allocation5 + $0x38] sm:$0xff]
    %v36 = vld [vmem:[#allocation5 + $0x40] sm:$0xff]
    %v37 = vld [vmem:[#allocation5 + $0x48] sm:$0xff]
    %v38 = vld [vmem:[#allocation5 + $0x50] sm:$0xff]
    %v39 = vld [vmem:[#allocation5 + $0x58] sm:$0xff]
    %v40 = vld [vmem:[#allocation5 + $0x60] sm:$0xff]
    %v41 = vld [vmem:[#allocation5 + $0x68] sm:$0xff]
    %v42 = vld [vmem:[#allocation5 + $0x70] sm:$0xff]
    %v43 = vld [vmem:[#allocation5 + $0x78] sm:$0xff]
    %60 = vrot.lane.b32.xlu0 %v28, 1
    %v61 = vpop.permute.xlu0 %60
    %62 = vrot.lane.b32.xlu0 %v29, 1
    %v63 = vpop.permute.xlu0 %62
    %64 = vrot.lane.b32.xlu0 %v30, 1
    %v65 = vpop.permute.xlu0 %64
    %66 = vrot.lane.b32.xlu0 %v31, 1
    %v67 = vpop.permute.xlu0 %66
    %68 = vrot.lane.b32.xlu0 %v32, 1
    %v69 = vpop.permute.xlu0 %68
    %70 = vrot.lane.b32.xlu0 %v33, 1
    %v71 = vpop.permute.xlu0 %70
    %72 = vrot.lane.b32.xlu0 %v34, 1
    %v73 = vpop.permute.xlu0 %72
    %74 = vrot.lane.b32.xlu0 %v35, 1
    %v75 = vpop.permute.xlu0 %74
    %76 = vrot.lane.b32.xlu0 %v36, 1
    %v77 = vpop.permute.xlu0 %76
    %78 = vrot.lane.b32.xlu0 %v37, 1
    %v79 = vpop.permute.xlu0 %78
    %80 = vrot.lane.b32.xlu0 %v38, 1
    %v81 = vpop.permute.xlu0 %80
    %82 = vrot.lane.b32.xlu0 %v39, 1
    %v83 = vpop.permute.xlu0 %82
    %84 = vrot.lane.b32.xlu0 %v40, 1
    %v85 = vpop.permute.xlu0 %84
    %86 = vrot.lane.b32.xlu0 %v41, 1
    %v87 = vpop.permute.xlu0 %86
    %88 = vrot.lane.b32.xlu0 %v42, 1
    %v89 = vpop.permute.xlu0 %88
    %90 = vrot.lane.b32.xlu0 %v43, 1
    %v91 = vpop.permute.xlu0 %90
    %vm108 = vcmask 138248
    %109 = vst.msk [vmem:[#allocation2 + $0x1] sm:$0xff] %vm108, %v61
    %110 = vst.msk [vmem:[#allocation2 + $0x9] sm:$0xff] %vm108, %v63
    %111 = vst.msk [vmem:[#allocation2 + $0x19] sm:$0xff] %vm108, %v65
    %112 = vst.msk [vmem:[#allocation2 + $0x21] sm:$0xff] %vm108, %v67
    %113 = vst.msk [vmem:[#allocation2 + $0x31] sm:$0xff] %vm108, %v69
    %114 = vst.msk [vmem:[#allocation2 + $0x39] sm:$0xff] %vm108, %v71
    %115 = vst.msk [vmem:[#allocation2 + $0x49] sm:$0xff] %vm108, %v73
    %116 = vst.msk [vmem:[#allocation2 + $0x51] sm:$0xff] %vm108, %v75
    %117 = vst.msk [vmem:[#allocation2 + $0x61] sm:$0xff] %vm108, %v77
    %118 = vst.msk [vmem:[#allocation2 + $0x69] sm:$0xff] %vm108, %v79
    %119 = vst.msk [vmem:[#allocation2 + $0x79] sm:$0xff] %vm108, %v81
    %120 = vst.msk [vmem:[#allocation2 + $0x81] sm:$0xff] %vm108, %v83
    %121 = vst.msk [vmem:[#allocation2 + $0x91] sm:$0xff] %vm108, %v85
    %122 = vst.msk [vmem:[#allocation2 + $0x99] sm:$0xff] %vm108, %v87
    %123 = vst.msk [vmem:[#allocation2 + $0xa9] sm:$0xff] %vm108, %v89
    %124 = vst.msk [vmem:[#allocation2 + $0xb1] sm:$0xff] %vm108, %v91
    %vm125 = vcmask 7168
    %126 = vst.msk [vmem:[#allocation2 + $0x1] sm:$0xff] %vm125, %v28
    %127 = vst.msk [vmem:[#allocation2 + $0x9] sm:$0xff] %vm125, %v29
    %128 = vst.msk [vmem:[#allocation2 + $0x19] sm:$0xff] %vm125, %v30
    %129 = vst.msk [vmem:[#allocation2 + $0x21] sm:$0xff] %vm125, %v31
    %130 = vst.msk [vmem:[#allocation2 + $0x31] sm:$0xff] %vm125, %v32
    %131 = vst.msk [vmem:[#allocation2 + $0x39] sm:$0xff] %vm125, %v33
    %132 = vst.msk [vmem:[#allocation2 + $0x49] sm:$0xff] %vm125, %v34
    %133 = vst.msk [vmem:[#allocation2 + $0x51] sm:$0xff] %vm125, %v35
    %134 = vst.msk [vmem:[#allocation2 + $0x61] sm:$0xff] %vm125, %v36
    %135 = vst.msk [vmem:[#allocation2 + $0x69] sm:$0xff] %vm125, %v37
    %136 = vst.msk [vmem:[#allocation2 + $0x79] sm:$0xff] %vm125, %v38
    %137 = vst.msk [vmem:[#allocation2 + $0x81] sm:$0xff] %vm125, %v39
    %138 = vst.msk [vmem:[#allocation2 + $0x91] sm:$0xff] %vm125, %v40
    %139 = vst.msk [vmem:[#allocation2 + $0x99] sm:$0xff] %vm125, %v41
    %140 = vst.msk [vmem:[#allocation2 + $0xa9] sm:$0xff] %vm125, %v42
    %141 = vst.msk [vmem:[#allocation2 + $0xb1] sm:$0xff] %vm125, %v43
    %142 = vrot.lane.b32.xlu0 %v28, 2
    %v143 = vpop.permute.xlu0 %142
    %144 = vrot.lane.b32.xlu0 %v29, 2
    %v145 = vpop.permute.xlu0 %144
    %146 = vrot.lane.b32.xlu0 %v30, 2
    %v147 = vpop.permute.xlu0 %146
    %148 = vrot.lane.b32.xlu0 %v31, 2
    %v149 = vpop.permute.xlu0 %148
    %150 = vrot.lane.b32.xlu0 %v32, 2
    %v151 = vpop.permute.xlu0 %150
    %152 = vrot.lane.b32.xlu0 %v33, 2
    %v153 = vpop.permute.xlu0 %152
    %154 = vrot.lane.b32.xlu0 %v34, 2
    %v155 = vpop.permute.xlu0 %154
    %156 = vrot.lane.b32.xlu0 %v35, 2
    %v157 = vpop.permute.xlu0 %156
    %158 = vrot.lane.b32.xlu0 %v36, 2
    %v159 = vpop.permute.xlu0 %158
    %160 = vrot.lane.b32.xlu0 %v37, 2
    %v161 = vpop.permute.xlu0 %160
    %162 = vrot.lane.b32.xlu0 %v38, 2
    %v163 = vpop.permute.xlu0 %162
    %164 = vrot.lane.b32.xlu0 %v39, 2
    %v165 = vpop.permute.xlu0 %164
    %166 = vrot.lane.b32.xlu0 %v40, 2
    %v167 = vpop.permute.xlu0 %166
    %168 = vrot.lane.b32.xlu0 %v41, 2
    %v169 = vpop.permute.xlu0 %168
    %170 = vrot.lane.b32.xlu0 %v42, 2
    %v171 = vpop.permute.xlu0 %170
    %172 = vrot.lane.b32.xlu0 %v43, 2
    %v173 = vpop.permute.xlu0 %172
    %vm190 = vcmask 146568
    %191 = vst.msk [vmem:[#allocation2 + $0x1] sm:$0xff] %vm190, %v143
    %192 = vst.msk [vmem:[#allocation2 + $0x9] sm:$0xff] %vm190, %v145
    %193 = vst.msk [vmem:[#allocation2 + $0x19] sm:$0xff] %vm190, %v147
    %194 = vst.msk [vmem:[#allocation2 + $0x21] sm:$0xff] %vm190, %v149
    %195 = vst.msk [vmem:[#allocation2 + $0x31] sm:$0xff] %vm190, %v151
    %196 = vst.msk [vmem:[#allocation2 + $0x39] sm:$0xff] %vm190, %v153
    %197 = vst.msk [vmem:[#allocation2 + $0x49] sm:$0xff] %vm190, %v155
    %198 = vst.msk [vmem:[#allocation2 + $0x51] sm:$0xff] %vm190, %v157
    %199 = vst.msk [vmem:[#allocation2 + $0x61] sm:$0xff] %vm190, %v159
    %200 = vst.msk [vmem:[#allocation2 + $0x69] sm:$0xff] %vm190, %v161
    %201 = vst.msk [vmem:[#allocation2 + $0x79] sm:$0xff] %vm190, %v163
    %202 = vst.msk [vmem:[#allocation2 + $0x81] sm:$0xff] %vm190, %v165
    %203 = vst.msk [vmem:[#allocation2 + $0x91] sm:$0xff] %vm190, %v167
    %204 = vst.msk [vmem:[#allocation2 + $0x99] sm:$0xff] %vm190, %v169
    %205 = vst.msk [vmem:[#allocation2 + $0xa9] sm:$0xff] %vm190, %v171
    %206 = vst.msk [vmem:[#allocation2 + $0xb1] sm:$0xff] %vm190, %v173
    %v207 = vld [vmem:[#allocation2 + $0x1] sm:$0x1]
    %v208 = vld [vmem:[#allocation2 + $0x19] sm:$0x1]
    %v209 = vld [vmem:[#allocation2 + $0x31] sm:$0x1]
    %v210 = vld [vmem:[#allocation2 + $0x49] sm:$0x1]
    %v211 = vld [vmem:[#allocation2 + $0x61] sm:$0x1]
    %v212 = vld [vmem:[#allocation2 + $0x79] sm:$0x1]
    %v213 = vld [vmem:[#allocation2 + $0x91] sm:$0x1]
    %v214 = vld [vmem:[#allocation2 + $0xa9] sm:$0x1]
    %vm215 = vcmask 139264
    %216 = vst.msk [vmem:[#allocation2] sm:$0x1] %vm215, %v207
    %217 = vst.msk [vmem:[#allocation2 + $0x18] sm:$0x1] %vm215, %v208
    %218 = vst.msk [vmem:[#allocation2 + $0x30] sm:$0x1] %vm215, %v209
    %219 = vst.msk [vmem:[#allocation2 + $0x48] sm:$0x1] %vm215, %v210
    %220 = vst.msk [vmem:[#allocation2 + $0x60] sm:$0x1] %vm215, %v211
    %221 = vst.msk [vmem:[#allocation2 + $0x78] sm:$0x1] %vm215, %v212
    %222 = vst.msk [vmem:[#allocation2 + $0x90] sm:$0x1] %vm215, %v213
    %223 = vst.msk [vmem:[#allocation2 + $0xa8] sm:$0x1] %vm215, %v214
    %v224 = vld [vmem:[#allocation2 + $0x10] sm:$0x1]
    %v225 = vld [vmem:[#allocation2 + $0x28] sm:$0x1]
    %v226 = vld [vmem:[#allocation2 + $0x40] sm:$0x1]
    %v227 = vld [vmem:[#allocation2 + $0x58] sm:$0x1]
    %v228 = vld [vmem:[#allocation2 + $0x70] sm:$0x1]
    %v229 = vld [vmem:[#allocation2 + $0x88] sm:$0x1]
    %v230 = vld [vmem:[#allocation2 + $0xa0] sm:$0x1]
    %v231 = vld [vmem:[#allocation2 + $0xb8] sm:$0x1]
    %232 = vst.msk [vmem:[#allocation2 + $0x11] sm:$0x1] %vm215, %v224
    %233 = vst.msk [vmem:[#allocation2 + $0x29] sm:$0x1] %vm215, %v225
    %234 = vst.msk [vmem:[#allocation2 + $0x41] sm:$0x1] %vm215, %v226
    %235 = vst.msk [vmem:[#allocation2 + $0x59] sm:$0x1] %vm215, %v227
    %236 = vst.msk [vmem:[#allocation2 + $0x71] sm:$0x1] %vm215, %v228
    %237 = vst.msk [vmem:[#allocation2 + $0x89] sm:$0x1] %vm215, %v229
    %238 = vst.msk [vmem:[#allocation2 + $0xa1] sm:$0x1] %vm215, %v230
    %239 = vst.msk [vmem:[#allocation2 + $0xb9] sm:$0x1] %vm215, %v231
    %s240 = sld [smem:[#allocation4]]
    %s241 = sld [smem:[#allocation4 + $0x1]]
    %s242 = sld [smem:[#allocation4 + $0x2]]
    %s243 = sld [smem:[#allocation4 + $0x3]]
    %s244 = sld [smem:[#allocation4 + $0x4]]
    %s245 = sld [smem:[#allocation4 + $0x5]]
    %s246 = sld [smem:[#allocation4 + $0x6]]
    %s247 = sld [smem:[#allocation4 + $0x7]]
    %s248 = sld [smem:[#allocation4 + $0x8]]
    %v249 = vld [vmem:[#allocation2] sm:$0xff]
    %v250 = vld [vmem:[#allocation2 + $0x8] sm:$0xff]
    %v251 = vld [vmem:[#allocation2 + $0x18] sm:$0xff]
    %v252 = vld [vmem:[#allocation2 + $0x20] sm:$0xff]
    %v253 = vld [vmem:[#allocation2 + $0x30] sm:$0xff]
    %v254 = vld [vmem:[#allocation2 + $0x38] sm:$0xff]
    %v255 = vld [vmem:[#allocation2 + $0x48] sm:$0xff]
    %v256 = vld [vmem:[#allocation2 + $0x50] sm:$0xff]
    %v257 = vld [vmem:[#allocation2 + $0x60] sm:$0xff]
    %v258 = vld [vmem:[#allocation2 + $0x68] sm:$0xff]
    %v259 = vld [vmem:[#allocation2 + $0x78] sm:$0xff]
    %v260 = vld [vmem:[#allocation2 + $0x80] sm:$0xff]
    %v261 = vld [vmem:[#allocation2 + $0x90] sm:$0xff]
    %v262 = vld [vmem:[#allocation2 + $0x98] sm:$0xff]
    %v263 = vld [vmem:[#allocation2 + $0xa8] sm:$0xff]
    %v264 = vld [vmem:[#allocation2 + $0xb0] sm:$0xff]
    %v265 = vstv %s240
    %v266 = vmul.f32 %v265, %v249
    %v267 = vmul.f32 %v265, %v250
    %v268 = vmul.f32 %v265, %v251
    %v269 = vmul.f32 %v265, %v252
    %v270 = vmul.f32 %v265, %v253
    %v271 = vmul.f32 %v265, %v254
    %v272 = vmul.f32 %v265, %v255
    %v273 = vmul.f32 %v265, %v256
    %v274 = vmul.f32 %v265, %v257
    %v275 = vmul.f32 %v265, %v258
    %v276 = vmul.f32 %v265, %v259
    %v277 = vmul.f32 %v265, %v260
    %v278 = vmul.f32 %v265, %v261
    %v279 = vmul.f32 %v265, %v262
    %v280 = vmul.f32 %v265, %v263
    %v281 = vmul.f32 %v265, %v264
    %v282 = vstv %s241
    %v283 = vmul.f32 %v282, %v249
    %v284 = vmul.f32 %v282, %v250
    %v285 = vmul.f32 %v282, %v251
    %v286 = vmul.f32 %v282, %v252
    %v287 = vmul.f32 %v282, %v253
    %v288 = vmul.f32 %v282, %v254
    %v289 = vmul.f32 %v282, %v255
    %v290 = vmul.f32 %v282, %v256
    %v291 = vmul.f32 %v282, %v257
    %v292 = vmul.f32 %v282, %v258
    %v293 = vmul.f32 %v282, %v259
    %v294 = vmul.f32 %v282, %v260
    %v295 = vmul.f32 %v282, %v261
    %v296 = vmul.f32 %v282, %v262
    %v297 = vmul.f32 %v282, %v263
    %v298 = vmul.f32 %v282, %v264
    %315 = vrot.lane.b32.xlu0 %v283, 127
    %v316 = vpop.permute.xlu0 %315
    %317 = vrot.lane.b32.xlu0 %v284, 127
    %v318 = vpop.permute.xlu0 %317
    %319 = vrot.lane.b32.xlu0 %v285, 127
    %v320 = vpop.permute.xlu0 %319
    %321 = vrot.lane.b32.xlu0 %v286, 127
    %v322 = vpop.permute.xlu0 %321
    %323 = vrot.lane.b32.xlu0 %v287, 127
    %v324 = vpop.permute.xlu0 %323
    %325 = vrot.lane.b32.xlu0 %v288, 127
    %v326 = vpop.permute.xlu0 %325
    %327 = vrot.lane.b32.xlu0 %v289, 127
    %v328 = vpop.permute.xlu0 %327
    %329 = vrot.lane.b32.xlu0 %v290, 127
    %v330 = vpop.permute.xlu0 %329
    %331 = vrot.lane.b32.xlu0 %v291, 127
    %v332 = vpop.permute.xlu0 %331
    %333 = vrot.lane.b32.xlu0 %v292, 127
    %v334 = vpop.permute.xlu0 %333
    %335 = vrot.lane.b32.xlu0 %v293, 127
    %v336 = vpop.permute.xlu0 %335
    %337 = vrot.lane.b32.xlu0 %v294, 127
    %v338 = vpop.permute.xlu0 %337
    %339 = vrot.lane.b32.xlu0 %v295, 127
    %v340 = vpop.permute.xlu0 %339
    %341 = vrot.lane.b32.xlu0 %v296, 127
    %v342 = vpop.permute.xlu0 %341
    %343 = vrot.lane.b32.xlu0 %v297, 127
    %v344 = vpop.permute.xlu0 %343
    %345 = vrot.lane.b32.xlu0 %v298, 127
    %v346 = vpop.permute.xlu0 %345
    %v363 = vadd.f32 %v266, %v316
    %v364 = vadd.f32 %v267, %v318
    %v365 = vadd.f32 %v268, %v320
    %v366 = vadd.f32 %v269, %v322
    %v367 = vadd.f32 %v270, %v324
    %v368 = vadd.f32 %v271, %v326
    %v369 = vadd.f32 %v272, %v328
    %v370 = vadd.f32 %v273, %v330
    %v371 = vadd.f32 %v274, %v332
    %v372 = vadd.f32 %v275, %v334
    %v373 = vadd.f32 %v276, %v336
    %v374 = vadd.f32 %v277, %v338
    %v375 = vadd.f32 %v278, %v340
    %v376 = vadd.f32 %v279, %v342
    %v377 = vadd.f32 %v280, %v344
    %v378 = vadd.f32 %v281, %v346
    %v379 = vstv %s242
    %v380 = vmul.f32 %v379, %v249
    %v381 = vmul.f32 %v379, %v250
    %v382 = vmul.f32 %v379, %v251
    %v383 = vmul.f32 %v379, %v252
    %v384 = vmul.f32 %v379, %v253
    %v385 = vmul.f32 %v379, %v254
    %v386 = vmul.f32 %v379, %v255
    %v387 = vmul.f32 %v379, %v256
    %v388 = vmul.f32 %v379, %v257
    %v389 = vmul.f32 %v379, %v258
    %v390 = vmul.f32 %v379, %v259
    %v391 = vmul.f32 %v379, %v260
    %v392 = vmul.f32 %v379, %v261
    %v393 = vmul.f32 %v379, %v262
    %v394 = vmul.f32 %v379, %v263
    %v395 = vmul.f32 %v379, %v264
    %412 = vrot.lane.b32.xlu0 %v380, 126
    %v413 = vpop.permute.xlu0 %412
    %414 = vrot.lane.b32.xlu0 %v381, 126
    %v415 = vpop.permute.xlu0 %414
    %416 = vrot.lane.b32.xlu0 %v382, 126
    %v417 = vpop.permute.xlu0 %416
    %418 = vrot.lane.b32.xlu0 %v383, 126
    %v419 = vpop.permute.xlu0 %418
    %420 = vrot.lane.b32.xlu0 %v384, 126
    %v421 = vpop.permute.xlu0 %420
    %422 = vrot.lane.b32.xlu0 %v385, 126
    %v423 = vpop.permute.xlu0 %422
    %424 = vrot.lane.b32.xlu0 %v386, 126
    %v425 = vpop.permute.xlu0 %424
    %426 = vrot.lane.b32.xlu0 %v387, 126
    %v427 = vpop.permute.xlu0 %426
    %428 = vrot.lane.b32.xlu0 %v388, 126
    %v429 = vpop.permute.xlu0 %428
    %430 = vrot.lane.b32.xlu0 %v389, 126
    %v431 = vpop.permute.xlu0 %430
    %432 = vrot.lane.b32.xlu0 %v390, 126
    %v433 = vpop.permute.xlu0 %432
    %434 = vrot.lane.b32.xlu0 %v391, 126
    %v435 = vpop.permute.xlu0 %434
    %436 = vrot.lane.b32.xlu0 %v392, 126
    %v437 = vpop.permute.xlu0 %436
    %438 = vrot.lane.b32.xlu0 %v393, 126
    %v439 = vpop.permute.xlu0 %438
    %440 = vrot.lane.b32.xlu0 %v394, 126
    %v441 = vpop.permute.xlu0 %440
    %442 = vrot.lane.b32.xlu0 %v395, 126
    %v443 = vpop.permute.xlu0 %442
    %v460 = vadd.f32 %v363, %v413
    %v461 = vadd.f32 %v364, %v415
    %v462 = vadd.f32 %v365, %v417
    %v463 = vadd.f32 %v366, %v419
    %v464 = vadd.f32 %v367, %v421
    %v465 = vadd.f32 %v368, %v423
    %v466 = vadd.f32 %v369, %v425
    %v467 = vadd.f32 %v370, %v427
    %v468 = vadd.f32 %v371, %v429
    %v469 = vadd.f32 %v372, %v431
    %v470 = vadd.f32 %v373, %v433
    %v471 = vadd.f32 %v374, %v435
    %v472 = vadd.f32 %v375, %v437
    %v473 = vadd.f32 %v376, %v439
    %v474 = vadd.f32 %v377, %v441
    %v475 = vadd.f32 %v378, %v443
    %v476 = vld [vmem:[#allocation2 + $0x1] sm:$0xff]
    %v477 = vld [vmem:[#allocation2 + $0x9] sm:$0xff]
    %v478 = vld [vmem:[#allocation2 + $0x19] sm:$0xff]
    %v479 = vld [vmem:[#allocation2 + $0x21] sm:$0xff]
    %v480 = vld [vmem:[#allocation2 + $0x31] sm:$0xff]
    %v481 = vld [vmem:[#allocation2 + $0x39] sm:$0xff]
    %v482 = vld [vmem:[#allocation2 + $0x49] sm:$0xff]
    %v483 = vld [vmem:[#allocation2 + $0x51] sm:$0xff]
    %v484 = vld [vmem:[#allocation2 + $0x61] sm:$0xff]
    %v485 = vld [vmem:[#allocation2 + $0x69] sm:$0xff]
    %v486 = vld [vmem:[#allocation2 + $0x79] sm:$0xff]
    %v487 = vld [vmem:[#allocation2 + $0x81] sm:$0xff]
    %v488 = vld [vmem:[#allocation2 + $0x91] sm:$0xff]
    %v489 = vld [vmem:[#allocation2 + $0x99] sm:$0xff]
    %v490 = vld [vmem:[#allocation2 + $0xa9] sm:$0xff]
    %v491 = vld [vmem:[#allocation2 + $0xb1] sm:$0xff]
    %v492 = vstv %s243
    %v493 = vmul.f32 %v492, %v476
    %v494 = vmul.f32 %v492, %v477
    %v495 = vmul.f32 %v492, %v478
    %v496 = vmul.f32 %v492, %v479
    %v497 = vmul.f32 %v492, %v480
    %v498 = vmul.f32 %v492, %v481
    %v499 = vmul.f32 %v492, %v482
    %v500 = vmul.f32 %v492, %v483
    %v501 = vmul.f32 %v492, %v484
    %v502 = vmul.f32 %v492, %v485
    %v503 = vmul.f32 %v492, %v486
    %v504 = vmul.f32 %v492, %v487
    %v505 = vmul.f32 %v492, %v488
    %v506 = vmul.f32 %v492, %v489
    %v507 = vmul.f32 %v492, %v490
    %v508 = vmul.f32 %v492, %v491
    %v509 = vadd.f32 %v460, %v493
    %v510 = vadd.f32 %v461, %v494
    %v511 = vadd.f32 %v462, %v495
    %v512 = vadd.f32 %v463, %v496
    %v513 = vadd.f32 %v464, %v497
    %v514 = vadd.f32 %v465, %v498
    %v515 = vadd.f32 %v466, %v499
    %v516 = vadd.f32 %v467, %v500
    %v517 = vadd.f32 %v468, %v501
    %v518 = vadd.f32 %v469, %v502
    %v519 = vadd.f32 %v470, %v503
    %v520 = vadd.f32 %v471, %v504
    %v521 = vadd.f32 %v472, %v505
    %v522 = vadd.f32 %v473, %v506
    %v523 = vadd.f32 %v474, %v507
    %v524 = vadd.f32 %v475, %v508
    %v525 = vstv %s244
    %v526 = vmul.f32 %v525, %v476
    %v527 = vmul.f32 %v525, %v477
    %v528 = vmul.f32 %v525, %v478
    %v529 = vmul.f32 %v525, %v479
    %v530 = vmul.f32 %v525, %v480
    %v531 = vmul.f32 %v525, %v481
    %v532 = vmul.f32 %v525, %v482
    %v533 = vmul.f32 %v525, %v483
    %v534 = vmul.f32 %v525, %v484
    %v535 = vmul.f32 %v525, %v485
    %v536 = vmul.f32 %v525, %v486
    %v537 = vmul.f32 %v525, %v487
    %v538 = vmul.f32 %v525, %v488
    %v539 = vmul.f32 %v525, %v489
    %v540 = vmul.f32 %v525, %v490
    %v541 = vmul.f32 %v525, %v491
    %558 = vrot.lane.b32.xlu0 %v526, 127
    %v559 = vpop.permute.xlu0 %558
    %560 = vrot.lane.b32.xlu0 %v527, 127
    %v561 = vpop.permute.xlu0 %560
    %562 = vrot.lane.b32.xlu0 %v528, 127
    %v563 = vpop.permute.xlu0 %562
    %564 = vrot.lane.b32.xlu0 %v529, 127
    %v565 = vpop.permute.xlu0 %564
    %566 = vrot.lane.b32.xlu0 %v530, 127
    %v567 = vpop.permute.xlu0 %566
    %568 = vrot.lane.b32.xlu0 %v531, 127
    %v569 = vpop.permute.xlu0 %568
    %570 = vrot.lane.b32.xlu0 %v532, 127
    %v571 = vpop.permute.xlu0 %570
    %572 = vrot.lane.b32.xlu0 %v533, 127
    %v573 = vpop.permute.xlu0 %572
    %574 = vrot.lane.b32.xlu0 %v534, 127
    %v575 = vpop.permute.xlu0 %574
    %576 = vrot.lane.b32.xlu0 %v535, 127
    %v577 = vpop.permute.xlu0 %576
    %578 = vrot.lane.b32.xlu0 %v536, 127
    %v579 = vpop.permute.xlu0 %578
    %580 = vrot.lane.b32.xlu0 %v537, 127
    %v581 = vpop.permute.xlu0 %580
    %582 = vrot.lane.b32.xlu0 %v538, 127
    %v583 = vpop.permute.xlu0 %582
    %584 = vrot.lane.b32.xlu0 %v539, 127
    %v585 = vpop.permute.xlu0 %584
    %586 = vrot.lane.b32.xlu0 %v540, 127
    %v587 = vpop.permute.xlu0 %586
    %588 = vrot.lane.b32.xlu0 %v541, 127
    %v589 = vpop.permute.xlu0 %588
    %v606 = vadd.f32 %v509, %v559
    %v607 = vadd.f32 %v510, %v561
    %v608 = vadd.f32 %v511, %v563
    %v609 = vadd.f32 %v512, %v565
    %v610 = vadd.f32 %v513, %v567
    %v611 = vadd.f32 %v514, %v569
    %v612 = vadd.f32 %v515, %v571
    %v613 = vadd.f32 %v516, %v573
    %v614 = vadd.f32 %v517, %v575
    %v615 = vadd.f32 %v518, %v577
    %v616 = vadd.f32 %v519, %v579
    %v617 = vadd.f32 %v520, %v581
    %v618 = vadd.f32 %v521, %v583
    %v619 = vadd.f32 %v522, %v585
    %v620 = vadd.f32 %v523, %v587
    %v621 = vadd.f32 %v524, %v589
    %v622 = vstv %s245
    %v623 = vmul.f32 %v622, %v476
    %v624 = vmul.f32 %v622, %v477
    %v625 = vmul.f32 %v622, %v478
    %v626 = vmul.f32 %v622, %v479
    %v627 = vmul.f32 %v622, %v480
    %v628 = vmul.f32 %v622, %v481
    %v629 = vmul.f32 %v622, %v482
    %v630 = vmul.f32 %v622, %v483
    %v631 = vmul.f32 %v622, %v484
    %v632 = vmul.f32 %v622, %v485
    %v633 = vmul.f32 %v622, %v486
    %v634 = vmul.f32 %v622, %v487
    %v635 = vmul.f32 %v622, %v488
    %v636 = vmul.f32 %v622, %v489
    %v637 = vmul.f32 %v622, %v490
    %v638 = vmul.f32 %v622, %v491
    %655 = vrot.lane.b32.xlu0 %v623, 126
    %v656 = vpop.permute.xlu0 %655
    %657 = vrot.lane.b32.xlu0 %v624, 126
    %v658 = vpop.permute.xlu0 %657
    %659 = vrot.lane.b32.xlu0 %v625, 126
    %v660 = vpop.permute.xlu0 %659
    %661 = vrot.lane.b32.xlu0 %v626, 126
    %v662 = vpop.permute.xlu0 %661
    %663 = vrot.lane.b32.xlu0 %v627, 126
    %v664 = vpop.permute.xlu0 %663
    %665 = vrot.lane.b32.xlu0 %v628, 126
    %v666 = vpop.permute.xlu0 %665
    %667 = vrot.lane.b32.xlu0 %v629, 126
    %v668 = vpop.permute.xlu0 %667
    %669 = vrot.lane.b32.xlu0 %v630, 126
    %v670 = vpop.permute.xlu0 %669
    %671 = vrot.lane.b32.xlu0 %v631, 126
    %v672 = vpop.permute.xlu0 %671
    %673 = vrot.lane.b32.xlu0 %v632, 126
    %v674 = vpop.permute.xlu0 %673
    %675 = vrot.lane.b32.xlu0 %v633, 126
    %v676 = vpop.permute.xlu0 %675
    %677 = vrot.lane.b32.xlu0 %v634, 126
    %v678 = vpop.permute.xlu0 %677
    %679 = vrot.lane.b32.xlu0 %v635, 126
    %v680 = vpop.permute.xlu0 %679
    %681 = vrot.lane.b32.xlu0 %v636, 126
    %v682 = vpop.permute.xlu0 %681
    %683 = vrot.lane.b32.xlu0 %v637, 126
    %v684 = vpop.permute.xlu0 %683
    %685 = vrot.lane.b32.xlu0 %v638, 126
    %v686 = vpop.permute.xlu0 %685
    %v703 = vadd.f32 %v606, %v656
    %v704 = vadd.f32 %v607, %v658
    %v705 = vadd.f32 %v608, %v660
    %v706 = vadd.f32 %v609, %v662
    %v707 = vadd.f32 %v610, %v664
    %v708 = vadd.f32 %v611, %v666
    %v709 = vadd.f32 %v612, %v668
    %v710 = vadd.f32 %v613, %v670
    %v711 = vadd.f32 %v614, %v672
    %v712 = vadd.f32 %v615, %v674
    %v713 = vadd.f32 %v616, %v676
    %v714 = vadd.f32 %v617, %v678
    %v715 = vadd.f32 %v618, %v680
    %v716 = vadd.f32 %v619, %v682
    %v717 = vadd.f32 %v620, %v684
    %v718 = vadd.f32 %v621, %v686
    %v719 = vld [vmem:[#allocation2 + $0x2] sm:$0xff]
    %v720 = vld [vmem:[#allocation2 + $0xa] sm:$0xff]
    %v721 = vld [vmem:[#allocation2 + $0x1a] sm:$0xff]
    %v722 = vld [vmem:[#allocation2 + $0x22] sm:$0xff]
    %v723 = vld [vmem:[#allocation2 + $0x32] sm:$0xff]
    %v724 = vld [vmem:[#allocation2 + $0x3a] sm:$0xff]
    %v725 = vld [vmem:[#allocation2 + $0x4a] sm:$0xff]
    %v726 = vld [vmem:[#allocation2 + $0x52] sm:$0xff]
    %v727 = vld [vmem:[#allocation2 + $0x62] sm:$0xff]
    %v728 = vld [vmem:[#allocation2 + $0x6a] sm:$0xff]
    %v729 = vld [vmem:[#allocation2 + $0x7a] sm:$0xff]
    %v730 = vld [vmem:[#allocation2 + $0x82] sm:$0xff]
    %v731 = vld [vmem:[#allocation2 + $0x92] sm:$0xff]
    %v732 = vld [vmem:[#allocation2 + $0x9a] sm:$0xff]
    %v733 = vld [vmem:[#allocation2 + $0xaa] sm:$0xff]
    %v734 = vld [vmem:[#allocation2 + $0xb2] sm:$0xff]
    %v735 = vstv %s246
    %v736 = vmul.f32 %v735, %v719
    %v737 = vmul.f32 %v735, %v720
    %v738 = vmul.f32 %v735, %v721
    %v739 = vmul.f32 %v735, %v722
    %v740 = vmul.f32 %v735, %v723
    %v741 = vmul.f32 %v735, %v724
    %v742 = vmul.f32 %v735, %v725
    %v743 = vmul.f32 %v735, %v726
    %v744 = vmul.f32 %v735, %v727
    %v745 = vmul.f32 %v735, %v728
    %v746 = vmul.f32 %v735, %v729
    %v747 = vmul.f32 %v735, %v730
    %v748 = vmul.f32 %v735, %v731
    %v749 = vmul.f32 %v735, %v732
    %v750 = vmul.f32 %v735, %v733
    %v751 = vmul.f32 %v735, %v734
    %v752 = vadd.f32 %v703, %v736
    %v753 = vadd.f32 %v704, %v737
    %v754 = vadd.f32 %v705, %v738
    %v755 = vadd.f32 %v706, %v739
    %v756 = vadd.f32 %v707, %v740
    %v757 = vadd.f32 %v708, %v741
    %v758 = vadd.f32 %v709, %v742
    %v759 = vadd.f32 %v710, %v743
    %v760 = vadd.f32 %v711, %v744
    %v761 = vadd.f32 %v712, %v745
    %v762 = vadd.f32 %v713, %v746
    %v763 = vadd.f32 %v714, %v747
    %v764 = vadd.f32 %v715, %v748
    %v765 = vadd.f32 %v716, %v749
    %v766 = vadd.f32 %v717, %v750
    %v767 = vadd.f32 %v718, %v751
    %v768 = vstv %s247
    %v769 = vmul.f32 %v768, %v719
    %v770 = vmul.f32 %v768, %v720
    %v771 = vmul.f32 %v768, %v721
    %v772 = vmul.f32 %v768, %v722
    %v773 = vmul.f32 %v768, %v723
    %v774 = vmul.f32 %v768, %v724
    %v775 = vmul.f32 %v768, %v725
    %v776 = vmul.f32 %v768, %v726
    %v777 = vmul.f32 %v768, %v727
    %v778 = vmul.f32 %v768, %v728
    %v779 = vmul.f32 %v768, %v729
    %v780 = vmul.f32 %v768, %v730
    %v781 = vmul.f32 %v768, %v731
    %v782 = vmul.f32 %v768, %v732
    %v783 = vmul.f32 %v768, %v733
    %v784 = vmul.f32 %v768, %v734
    %801 = vrot.lane.b32.xlu0 %v769, 127
    %v802 = vpop.permute.xlu0 %801
    %803 = vrot.lane.b32.xlu0 %v770, 127
    %v804 = vpop.permute.xlu0 %803
    %805 = vrot.lane.b32.xlu0 %v771, 127
    %v806 = vpop.permute.xlu0 %805
    %807 = vrot.lane.b32.xlu0 %v772, 127
    %v808 = vpop.permute.xlu0 %807
    %809 = vrot.lane.b32.xlu0 %v773, 127
    %v810 = vpop.permute.xlu0 %809
    %811 = vrot.lane.b32.xlu0 %v774, 127
    %v812 = vpop.permute.xlu0 %811
    %813 = vrot.lane.b32.xlu0 %v775, 127
    %v814 = vpop.permute.xlu0 %813
    %815 = vrot.lane.b32.xlu0 %v776, 127
    %v816 = vpop.permute.xlu0 %815
    %817 = vrot.lane.b32.xlu0 %v777, 127
    %v818 = vpop.permute.xlu0 %817
    %819 = vrot.lane.b32.xlu0 %v778, 127
    %v820 = vpop.permute.xlu0 %819
    %821 = vrot.lane.b32.xlu0 %v779, 127
    %v822 = vpop.permute.xlu0 %821
    %823 = vrot.lane.b32.xlu0 %v780, 127
    %v824 = vpop.permute.xlu0 %823
    %825 = vrot.lane.b32.xlu0 %v781, 127
    %v826 = vpop.permute.xlu0 %825
    %827 = vrot.lane.b32.xlu0 %v782, 127
    %v828 = vpop.permute.xlu0 %827
    %829 = vrot.lane.b32.xlu0 %v783, 127
    %v830 = vpop.permute.xlu0 %829
    %831 = vrot.lane.b32.xlu0 %v784, 127
    %v832 = vpop.permute.xlu0 %831
    %v849 = vadd.f32 %v752, %v802
    %v850 = vadd.f32 %v753, %v804
    %v851 = vadd.f32 %v754, %v806
    %v852 = vadd.f32 %v755, %v808
    %v853 = vadd.f32 %v756, %v810
    %v854 = vadd.f32 %v757, %v812
    %v855 = vadd.f32 %v758, %v814
    %v856 = vadd.f32 %v759, %v816
    %v857 = vadd.f32 %v760, %v818
    %v858 = vadd.f32 %v761, %v820
    %v859 = vadd.f32 %v762, %v822
    %v860 = vadd.f32 %v763, %v824
    %v861 = vadd.f32 %v764, %v826
    %v862 = vadd.f32 %v765, %v828
    %v863 = vadd.f32 %v766, %v830
    %v864 = vadd.f32 %v767, %v832
    %v865 = vstv %s248
    %v866 = vmul.f32 %v865, %v719
    %v867 = vmul.f32 %v865, %v720
    %v868 = vmul.f32 %v865, %v721
    %v869 = vmul.f32 %v865, %v722
    %v870 = vmul.f32 %v865, %v723
    %v871 = vmul.f32 %v865, %v724
    %v872 = vmul.f32 %v865, %v725
    %v873 = vmul.f32 %v865, %v726
    %v874 = vmul.f32 %v865, %v727
    %v875 = vmul.f32 %v865, %v728
    %v876 = vmul.f32 %v865, %v729
    %v877 = vmul.f32 %v865, %v730
    %v878 = vmul.f32 %v865, %v731
    %v879 = vmul.f32 %v865, %v732
    %v880 = vmul.f32 %v865, %v733
    %v881 = vmul.f32 %v865, %v734
    %898 = vrot.lane.b32.xlu0 %v866, 126
    %v899 = vpop.permute.xlu0 %898
    %900 = vrot.lane.b32.xlu0 %v867, 126
    %v901 = vpop.permute.xlu0 %900
    %902 = vrot.lane.b32.xlu0 %v868, 126
    %v903 = vpop.permute.xlu0 %902
    %904 = vrot.lane.b32.xlu0 %v869, 126
    %v905 = vpop.permute.xlu0 %904
    %906 = vrot.lane.b32.xlu0 %v870, 126
    %v907 = vpop.permute.xlu0 %906
    %908 = vrot.lane.b32.xlu0 %v871, 126
    %v909 = vpop.permute.xlu0 %908
    %910 = vrot.lane.b32.xlu0 %v872, 126
    %v911 = vpop.permute.xlu0 %910
    %912 = vrot.lane.b32.xlu0 %v873, 126
    %v913 = vpop.permute.xlu0 %912
    %914 = vrot.lane.b32.xlu0 %v874, 126
    %v915 = vpop.permute.xlu0 %914
    %916 = vrot.lane.b32.xlu0 %v875, 126
    %v917 = vpop.permute.xlu0 %916
    %918 = vrot.lane.b32.xlu0 %v876, 126
    %v919 = vpop.permute.xlu0 %918
    %920 = vrot.lane.b32.xlu0 %v877, 126
    %v921 = vpop.permute.xlu0 %920
    %922 = vrot.lane.b32.xlu0 %v878, 126
    %v923 = vpop.permute.xlu0 %922
    %924 = vrot.lane.b32.xlu0 %v879, 126
    %v925 = vpop.permute.xlu0 %924
    %926 = vrot.lane.b32.xlu0 %v880, 126
    %v927 = vpop.permute.xlu0 %926
    %928 = vrot.lane.b32.xlu0 %v881, 126
    %v929 = vpop.permute.xlu0 %928
    %v946 = vadd.f32 %v849, %v899
    %v947 = vadd.f32 %v850, %v901
    %v948 = vadd.f32 %v851, %v903
    %v949 = vadd.f32 %v852, %v905
    %v950 = vadd.f32 %v853, %v907
    %v951 = vadd.f32 %v854, %v909
    %v952 = vadd.f32 %v855, %v911
    %v953 = vadd.f32 %v856, %v913
    %v954 = vadd.f32 %v857, %v915
    %v955 = vadd.f32 %v858, %v917
    %v956 = vadd.f32 %v859, %v919
    %v957 = vadd.f32 %v860, %v921
    %v958 = vadd.f32 %v861, %v923
    %v959 = vadd.f32 %v862, %v925
    %v960 = vadd.f32 %v863, %v927
    %v961 = vadd.f32 %v864, %v929
    %vm962 = vcmask 130048
    %963 = vst.msk [vmem:[#allocation8] sm:$0xff] %vm962, %v946
    %964 = vst.msk [vmem:[#allocation8 + $0x8] sm:$0xff] %vm962, %v947
    %965 = vst.msk [vmem:[#allocation8 + $0x10] sm:$0xff] %vm962, %v948
    %966 = vst.msk [vmem:[#allocation8 + $0x18] sm:$0xff] %vm962, %v949
    %967 = vst.msk [vmem:[#allocation8 + $0x20] sm:$0xff] %vm962, %v950
    %968 = vst.msk [vmem:[#allocation8 + $0x28] sm:$0xff] %vm962, %v951
    %969 = vst.msk [vmem:[#allocation8 + $0x30] sm:$0xff] %vm962, %v952
    %970 = vst.msk [vmem:[#allocation8 + $0x38] sm:$0xff] %vm962, %v953
    %971 = vst.msk [vmem:[#allocation8 + $0x40] sm:$0xff] %vm962, %v954
    %972 = vst.msk [vmem:[#allocation8 + $0x48] sm:$0xff] %vm962, %v955
    %973 = vst.msk [vmem:[#allocation8 + $0x50] sm:$0xff] %vm962, %v956
    %974 = vst.msk [vmem:[#allocation8 + $0x58] sm:$0xff] %vm962, %v957
    %975 = vst.msk [vmem:[#allocation8 + $0x60] sm:$0xff] %vm962, %v958
    %976 = vst.msk [vmem:[#allocation8 + $0x68] sm:$0xff] %vm962, %v959
    %977 = vst.msk [vmem:[#allocation8 + $0x70] sm:$0xff] %vm962, %v960
    %978 = vst.msk [vmem:[#allocation8 + $0x78] sm:$0xff] %vm962, %v961
    // Predicated region
    $region10: #{tpu_custom_call.1} parent=1 // pred_check
      _
    $region11: #{tpu_custom_call.1} parent=1 // pred_check_branch
      %980 = sbr.rel (0) target = $region13
    $region12: #{tpu_custom_call.1} parent=1 // pred_region
      %s982 = ssub.s32 2048, 2048
      %983 = vsyncadd [#allocation7], %s982
      %s984 = sshll.u32 [#allocation8], 4
      %s985 = int_to_ptr.vmem [resolvable:$true] %s984
      %990 = dma.vmem_to_hbm [thread:$0]  %s985, 2048, %s2, [#allocation7], 128, 128, 8
    $region13: #{tpu_custom_call.1} parent=1 // pred_fallthru
      _
    // Predicated region
    $region14: #{tpu_custom_call.1} parent=1 // pred_check
      _
    $region15: #{tpu_custom_call.1} parent=1 // pred_check_branch
      %992 = sbr.rel (0) target = $region17
    $region16: #{tpu_custom_call.1} parent=1 // pred_region
      %993 = dma.done [#allocation7], 2048
    $region17: #{tpu_custom_call.1} parent=1 // pred_fallthru
      _
    %994 = vsyncpa [#allocation6], 1
    %995 = vsyncpa [#allocation7], 1

</llo_original>
